<compile_context>
chip_gen: v6e
topology: v6e:2x2x1
jax: 0.10.0
libtpu: 0.0.40
codegen_flags: <defaults>
</compile_context>

<pallas_src>
import jax
import jax.numpy as jnp
import numpy as np
from jax.experimental import pallas as pl
from jax.experimental.pallas import tpu as pltpu

# ---- module config (matches nn.Module __init__) ----
EMBED_DIM = 32            # embed_dim
COMPRESS_DIM = 32         # compress_dim (small for the test; divisible by 4)
KERNEL_SIZES = (3, 5, 7)
NUM_GROUPS = 4
GN_EPS = 1e-5
KMAX = max(KERNEL_SIZES)
MAX_PAD = KMAX // 2       # = 3
OFF = 8                   # sublane-aligned interior offset inside the halo scratch
C3 = len(KERNEL_SIZES) * COMPRESS_DIM
CG = COMPRESS_DIM // NUM_GROUPS


def _msc_kernel(x_ref, wf_ref, cgb_ref, pwb_ref, gmat_ref, o_ref, xp_s):
    # x_ref/o_ref: (Bt, T, D); wf_ref: (KMAX*D, 3C) fused conv weight;
    # cgb_ref: (3, 3C) = [conv bias; gn gamma; gn beta];
    # pwb_ref: (3C+1, D) = [proj W; proj b];
    # gmat_ref: (3C, 3C) block-diag group-mean matrix with 1/(T*Cg) folded in;
    # xp_s: VMEM scratch (Bt, T + 2*OFF, D) holding the zero-halo'd input.
    Bt, T, D = x_ref.shape
    f32 = jnp.float32
    M = Bt * T

    x = x_ref[...].astype(f32)                          # (Bt, T, D) aligned load

    # Zero only the two 8-row halo bands (aligned), then the aligned interior.
    halo = jnp.zeros((Bt, OFF, D), f32)
    xp_s[:, 0:OFF, :] = halo
    xp_s[:, OFF + T:OFF + T + OFF, :] = halo
    xp_s[:, OFF:OFF + T, :] = x

    # ---- Conv1d of all 3 branches: KMAX accumulated matmuls over shifted views.
    conv = None
    for j in range(KMAX):
        lo = OFF - MAX_PAD + j
        xj = xp_s[:, lo:lo + T, :].reshape(M, D)        # shifted window (Bt*T, D)
        pj = jnp.dot(xj, wf_ref[j * D:(j + 1) * D, :],
                     preferred_element_type=f32)        # (Bt*T, 3C)
        conv = pj if conv is None else conv + pj
    conv = conv + cgb_ref[0:1, :]                       # conv bias

    # ---- GroupNorm (per sample, contiguous 8-channel groups) + ReLU.
    #      Stats: channel sums over T; per-group reduce+broadcast via one tiny
    #      block-diagonal matmul on (Bt, 3C) stat rows.
    conv3 = conv.reshape(Bt, T, C3)
    s1 = jnp.sum(conv3, axis=1)                         # (Bt, 3C)
    s2 = jnp.sum(conv3 * conv3, axis=1)                 # (Bt, 3C)
    mean_c = jnp.dot(s1, gmat_ref[...], preferred_element_type=f32)   # (Bt, 3C)
    ex2_c = jnp.dot(s2, gmat_ref[...], preferred_element_type=f32)    # (Bt, 3C)
    inv_c = jax.lax.rsqrt(ex2_c - mean_c * mean_c + GN_EPS)
    scale = inv_c * cgb_ref[1:2, :]                     # gamma * inv_std
    shift = cgb_ref[2:3, :] - mean_c * scale            # beta - mean*scale
    act = jnp.maximum(conv3 * scale[:, None, :] + shift[:, None, :], 0.0)

    # ---- Fused projection Linear(3C -> D): one matmul; bias + residual once.
    proj = jnp.dot(act.reshape(M, C3), pwb_ref[0:C3, :],
                   preferred_element_type=f32)          # (Bt*T, D)
    out = proj.reshape(Bt, T, D) + pwb_ref[C3:C3 + 1, :] + x
    # TODO(synk): dropout is identity (eval mode); training-mode dropout would
    # need pltpu PRNG + stochastic masking.
    o_ref[...] = out.astype(o_ref.dtype)                # single aligned store


def _pack_params(params):
    """Pack the 14 PyTorch-shaped parameters into 3 kernel arrays."""
    C, D = COMPRESS_DIM, EMBED_DIM
    # Fused conv weight: row index = tap*D + in_channel, col = branch*C + out.
    # Branches with k < KMAX get zero taps (exact: they multiply data by 0).
    wf = jnp.zeros((KMAX, D, C3), jnp.float32)
    for i, k in enumerate(KERNEL_SIZES):
        off = MAX_PAD - k // 2
        wt = jnp.transpose(params["conv_w"][i], (2, 1, 0))     # (k, D, C)
        wf = wf.at[off:off + k, :, i * C:(i + 1) * C].set(wt)
    wf = wf.reshape(KMAX * D, C3)

    cgb = jnp.stack([
        jnp.concatenate(params["conv_b"]),
        jnp.concatenate(params["gn_g"]),
        jnp.concatenate(params["gn_b"]),
    ], axis=0).astype(jnp.float32)                             # (3, 3C)

    pwb = jnp.concatenate([jnp.transpose(params["proj_w"]),    # (3C, D)
                           params["proj_b"].reshape(1, D)],
                          axis=0).astype(jnp.float32)          # (3C + 1, D)
    return wf, cgb, pwb


def _group_matrix(T):
    """Block-diagonal (3C, 3C) matrix: ones within each 8-channel GroupNorm
    group, scaled by 1/(T*Cg).  s @ gmat == per-group mean broadcast back."""
    gid = np.arange(C3) // CG
    a = (gid[:, None] == gid[None, :]).astype(np.float32) / float(T * CG)
    return jnp.asarray(a)


def _vmem_bytes(bt, T):
    """Rough f32 VMEM footprint of one grid step (scratch + double-buffered
    blocks + main intermediates + params)."""
    D = EMBED_DIM
    m = bt * T
    scratch = bt * (T + 2 * OFF) * D
    blocks = 2 * 2 * bt * T * D                     # double-buffered in + out
    interm = 3 * m * C3 + 2 * m * D                 # conv / act / proj temps
    prm = KMAX * D * C3 + 3 * C3 + (C3 + 1) * D + C3 * C3
    return 4 * (scratch + blocks + interm + 2 * prm)


def _pick_block_batch(B, T):
    """Samples per grid step.  Grow M = Bt*T toward ~256-1024 MXU rows (VMEM
    permitting) instead of shrinking the matmul just to create grid steps on
    single-TC chips.  Keep an even grid (v7x, 2 TCs) only when halving Bt
    still leaves M >= 256."""
    if B == 1 or T % 8 != 0:
        return 1
    divisors = [d for d in range(1, B + 1) if B % d == 0]
    ok = [d for d in divisors
          if d * T <= 1024 and _vmem_bytes(d, T) <= 12 * 1024 * 1024]
    bt = max(ok) if ok else 1
    if (B // bt) % 2 == 1 and bt % 2 == 0 and (bt // 2) * T >= 256:
        bt //= 2
    return bt


def multiscale_car(x, params):
    """x: (B, T, EMBED_DIM) float32  ->  (B, T, EMBED_DIM)."""
    B, T, D = x.shape
    assert D == EMBED_DIM
    wf, cgb, pwb = _pack_params(params)
    gmat = _group_matrix(T)
    Bt = _pick_block_batch(B, T)

    in_specs = [
        pl.BlockSpec((Bt, T, D), lambda b: (b, 0, 0)),        # x (conv + residual)
        pl.BlockSpec((KMAX * D, C3), lambda b: (0, 0)),       # fused conv weight
        pl.BlockSpec((3, C3), lambda b: (0, 0)),              # bias / gamma / beta
        pl.BlockSpec((C3 + 1, D), lambda b: (0, 0)),          # proj weight + bias
        pl.BlockSpec((C3, C3), lambda b: (0, 0)),             # group-mean matrix
    ]
    out_spec = pl.BlockSpec((Bt, T, D), lambda b: (b, 0, 0))

    fn = pl.pallas_call(
        _msc_kernel,
        out_shape=jax.ShapeDtypeStruct((B, T, D), x.dtype),
        grid=(B // Bt,),
        in_specs=in_specs,
        out_specs=out_spec,
        scratch_shapes=[pltpu.VMEM((Bt, T + 2 * OFF, D), jnp.float32)],
        compiler_params=pltpu.CompilerParams(
            dimension_semantics=("parallel",),
            vmem_limit_bytes=32 * 1024 * 1024),
    )
    return fn(x, wf, cgb, pwb, gmat)


# ---------- pure-JAX reference (independent path via lax.conv) ----------
def reference(x, params):
    B, T, D = x.shape
    C = COMPRESS_DIM
    xt = jnp.transpose(x, (0, 2, 1))   # (B, D, T)  == PyTorch x.transpose(1,2)
    outs = []
    for i, k in enumerate(KERNEL_SIZES):
        w = params["conv_w"][i]        # (C, D, k)
        b = params["conv_b"][i]
        y = jax.lax.conv_general_dilated(
            xt, w, window_strides=(1,), padding=[(k // 2, k // 2)],
            dimension_numbers=("NCH", "OIH", "NCH"))
        y = y + b[None, :, None]
        yg = y.reshape(B, NUM_GROUPS, C // NUM_GROUPS, T)
        m = yg.mean(axis=(2, 3), keepdims=True)
        v = ((yg - m) ** 2).mean(axis=(2, 3), keepdims=True)
        yn = ((yg - m) * jax.lax.rsqrt(v + GN_EPS)).reshape(B, C, T)
        yn = yn * params["gn_g"][i][None, :, None] + params["gn_b"][i][None, :, None]
        outs.append(jnp.maximum(yn, 0.0))
    cat = jnp.concatenate(outs, axis=1)          # (B, 3C, T)
    cat = jnp.transpose(cat, (0, 2, 1))          # (B, T, 3C)
    proj = cat @ params["proj_w"].T + params["proj_b"]
    return proj + x                               # dropout = identity (eval)


def init_params(key):
    C, D = COMPRESS_DIM, EMBED_DIM
    nb = len(KERNEL_SIZES)
    ks = jax.random.split(key, 4 * nb + 2)
    params = {"conv_w": [], "conv_b": [], "gn_g": [], "gn_b": []}
    for i, k in enumerate(KERNEL_SIZES):
        params["conv_w"].append(0.05 * jax.random.normal(ks[4 * i + 0], (C, D, k), jnp.float32))
        params["conv_b"].append(0.02 * jax.random.normal(ks[4 * i + 1], (C,), jnp.float32))
        params["gn_g"].append(1.0 + 0.1 * jax.random.normal(ks[4 * i + 2], (C,), jnp.float32))
        params["gn_b"].append(0.05 * jax.random.normal(ks[4 * i + 3], (C,), jnp.float32))
    params["proj_w"] = 0.05 * jax.random.normal(ks[-2], (D, nb * C), jnp.float32)
    params["proj_b"] = 0.02 * jax.random.normal(ks[-1], (D,), jnp.float32)
    return params


if __name__ == "__main__":
    key = jax.random.PRNGKey(0)
    kx, kp = jax.random.split(key)
    B, T = 2, 16
    x = jax.random.normal(kx, (B, T, EMBED_DIM), jnp.float32)
    params = init_params(kp)

    out = jax.block_until_ready(multiscale_car(x, params))
    ref = jax.block_until_ready(reference(x, params))
    np.testing.assert_allclose(np.asarray(out), np.asarray(ref),
                               rtol=1e-4, atol=1e-4)
    print("KERNEL_OK")
</pallas_src>

<mosaic_0001>
module attributes {stable_mosaic.version = 11 : i64} {
  func.func @_msc_kernel(%arg0: i32, %arg1: memref<2x16x32xf32, #tpu.memory_space<vmem>>, %arg2: memref<224x96xf32, #tpu.memory_space<vmem>>, %arg3: memref<3x96xf32, #tpu.memory_space<vmem>>, %arg4: memref<97x32xf32, #tpu.memory_space<vmem>>, %arg5: memref<96x96xf32, #tpu.memory_space<vmem>>, %arg6: memref<2x16x32xf32, #tpu.memory_space<vmem>>, %arg7: memref<2x32x32xf32, #tpu.memory_space<vmem>>) attributes {dimension_semantics = [#tpu.dimension_semantics<parallel>], iteration_bounds = array<i64: 1>, scalar_prefetch = 0 : i64, scratch_operands = 1 : i64, tpu.core_type = #tpu.core_type<tc>, window_params = [{transform_indices = @transform_0, window_bounds = array<i64: 2, 16, 32>}, {pipeline_mode = #tpu.pipeline_mode<synchronous>, transform_indices = @transform_1, window_bounds = array<i64: 224, 96>}, {pipeline_mode = #tpu.pipeline_mode<synchronous>, transform_indices = @transform_2, window_bounds = array<i64: 3, 96>}, {pipeline_mode = #tpu.pipeline_mode<synchronous>, transform_indices = @transform_3, window_bounds = array<i64: 97, 32>}, {pipeline_mode = #tpu.pipeline_mode<synchronous>, transform_indices = @transform_4, window_bounds = array<i64: 96, 96>}, {transform_indices = @transform_5, window_bounds = array<i64: 2, 16, 32>}]} {
    %c0 = arith.constant 0 : index
    %c0_0 = arith.constant 0 : index
    %c0_1 = arith.constant 0 : index
    %0 = vector.load %arg1[%c0, %c0_0, %c0_1] : memref<2x16x32xf32, #tpu.memory_space<vmem>>, vector<2x16x32xf32>
    %cst = arith.constant 0.000000e+00 : f32
    %1 = vector.broadcast %cst : f32 to vector<2x8x32xf32>
    %c0_2 = arith.constant 0 : index
    %c0_3 = arith.constant 0 : index
    %c0_4 = arith.constant 0 : index
    %2 = vector.load %arg7[%c0_2, %c0_3, %c0_4] : memref<2x32x32xf32, #tpu.memory_space<vmem>>, vector<2x8x32xf32>
    tpu.vector_store %arg7[%c0_2, %c0_3, %c0_4], %1 {strides = array<i32>} : memref<2x32x32xf32, #tpu.memory_space<vmem>>, vector<2x8x32xf32>,
    %c0_5 = arith.constant 0 : index
    %c24 = arith.constant 24 : index
    %c0_6 = arith.constant 0 : index
    %3 = vector.load %arg7[%c0_5, %c24, %c0_6] : memref<2x32x32xf32, #tpu.memory_space<vmem>>, vector<2x8x32xf32>
    tpu.vector_store %arg7[%c0_5, %c24, %c0_6], %1 {strides = array<i32>} : memref<2x32x32xf32, #tpu.memory_space<vmem>>, vector<2x8x32xf32>,
    %c0_7 = arith.constant 0 : index
    %c8 = arith.constant 8 : index
    %c0_8 = arith.constant 0 : index
    %4 = vector.load %arg7[%c0_7, %c8, %c0_8] : memref<2x32x32xf32, #tpu.memory_space<vmem>>, vector<2x16x32xf32>
    tpu.vector_store %arg7[%c0_7, %c8, %c0_8], %0 {strides = array<i32>} : memref<2x32x32xf32, #tpu.memory_space<vmem>>, vector<2x16x32xf32>,
    %c0_9 = arith.constant 0 : index
    %c5 = arith.constant 5 : index
    %c0_10 = arith.constant 0 : index
    %5 = vector.load %arg7[%c0_9, %c5, %c0_10] : memref<2x32x32xf32, #tpu.memory_space<vmem>>, vector<2x16x32xf32>
    %6 = vector.shape_cast %5 : vector<2x16x32xf32> to vector<32x32xf32>
    %c0_11 = arith.constant 0 : index
    %c0_12 = arith.constant 0 : index
    %7 = vector.load %arg2[%c0_11, %c0_12] : memref<224x96xf32, #tpu.memory_space<vmem>>, vector<32x96xf32>
    %cst_13 = arith.constant dense<0.000000e+00> : vector<32x96xf32>
    %8 = tpu.matmul %6, %7, %cst_13 {dimension_numbers = #tpu.dot_dimension_numbers<[1], [0], [0], [1], [0, 0, 1, 1], [], []>} : vector<32x32xf32>, vector<32x96xf32>, vector<32x96xf32> -> vector<32x96xf32>
    %c0_14 = arith.constant 0 : index
    %c6 = arith.constant 6 : index
    %c0_15 = arith.constant 0 : index
    %9 = vector.load %arg7[%c0_14, %c6, %c0_15] : memref<2x32x32xf32, #tpu.memory_space<vmem>>, vector<2x16x32xf32>
    %10 = vector.shape_cast %9 : vector<2x16x32xf32> to vector<32x32xf32>
    %c32 = arith.constant 32 : index
    %c0_16 = arith.constant 0 : index
    %11 = vector.load %arg2[%c32, %c0_16] : memref<224x96xf32, #tpu.memory_space<vmem>>, vector<32x96xf32>
    %cst_17 = arith.constant dense<0.000000e+00> : vector<32x96xf32>
    %12 = tpu.matmul %10, %11, %cst_17 {dimension_numbers = #tpu.dot_dimension_numbers<[1], [0], [0], [1], [0, 0, 1, 1], [], []>} : vector<32x32xf32>, vector<32x96xf32>, vector<32x96xf32> -> vector<32x96xf32>
    %13 = arith.addf %8, %12 : vector<32x96xf32>
    %c0_18 = arith.constant 0 : index
    %c7 = arith.constant 7 : index
    %c0_19 = arith.constant 0 : index
    %14 = vector.load %arg7[%c0_18, %c7, %c0_19] : memref<2x32x32xf32, #tpu.memory_space<vmem>>, vector<2x16x32xf32>
    %15 = vector.shape_cast %14 : vector<2x16x32xf32> to vector<32x32xf32>
    %c64 = arith.constant 64 : index
    %c0_20 = arith.constant 0 : index
    %16 = vector.load %arg2[%c64, %c0_20] : memref<224x96xf32, #tpu.memory_space<vmem>>, vector<32x96xf32>
    %cst_21 = arith.constant dense<0.000000e+00> : vector<32x96xf32>
    %17 = tpu.matmul %15, %16, %cst_21 {dimension_numbers = #tpu.dot_dimension_numbers<[1], [0], [0], [1], [0, 0, 1, 1], [], []>} : vector<32x32xf32>, vector<32x96xf32>, vector<32x96xf32> -> vector<32x96xf32>
    %18 = arith.addf %13, %17 : vector<32x96xf32>
    %c0_22 = arith.constant 0 : index
    %c8_23 = arith.constant 8 : index
    %c0_24 = arith.constant 0 : index
    %19 = vector.load %arg7[%c0_22, %c8_23, %c0_24] : memref<2x32x32xf32, #tpu.memory_space<vmem>>, vector<2x16x32xf32>
    %20 = vector.shape_cast %19 : vector<2x16x32xf32> to vector<32x32xf32>
    %c96 = arith.constant 96 : index
    %c0_25 = arith.constant 0 : index
    %21 = vector.load %arg2[%c96, %c0_25] : memref<224x96xf32, #tpu.memory_space<vmem>>, vector<32x96xf32>
    %cst_26 = arith.constant dense<0.000000e+00> : vector<32x96xf32>
    %22 = tpu.matmul %20, %21, %cst_26 {dimension_numbers = #tpu.dot_dimension_numbers<[1], [0], [0], [1], [0, 0, 1, 1], [], []>} : vector<32x32xf32>, vector<32x96xf32>, vector<32x96xf32> -> vector<32x96xf32>
    %23 = arith.addf %18, %22 : vector<32x96xf32>
    %c0_27 = arith.constant 0 : index
    %c9 = arith.constant 9 : index
    %c0_28 = arith.constant 0 : index
    %24 = vector.load %arg7[%c0_27, %c9, %c0_28] : memref<2x32x32xf32, #tpu.memory_space<vmem>>, vector<2x16x32xf32>
    %25 = vector.shape_cast %24 : vector<2x16x32xf32> to vector<32x32xf32>
    %c128 = arith.constant 128 : index
    %c0_29 = arith.constant 0 : index
    %26 = vector.load %arg2[%c128, %c0_29] : memref<224x96xf32, #tpu.memory_space<vmem>>, vector<32x96xf32>
    %cst_30 = arith.constant dense<0.000000e+00> : vector<32x96xf32>
    %27 = tpu.matmul %25, %26, %cst_30 {dimension_numbers = #tpu.dot_dimension_numbers<[1], [0], [0], [1], [0, 0, 1, 1], [], []>} : vector<32x32xf32>, vector<32x96xf32>, vector<32x96xf32> -> vector<32x96xf32>
    %28 = arith.addf %23, %27 : vector<32x96xf32>
    %c0_31 = arith.constant 0 : index
    %c10 = arith.constant 10 : index
    %c0_32 = arith.constant 0 : index
    %29 = vector.load %arg7[%c0_31, %c10, %c0_32] : memref<2x32x32xf32, #tpu.memory_space<vmem>>, vector<2x16x32xf32>
    %30 = vector.shape_cast %29 : vector<2x16x32xf32> to vector<32x32xf32>
    %c160 = arith.constant 160 : index
    %c0_33 = arith.constant 0 : index
    %31 = vector.load %arg2[%c160, %c0_33] : memref<224x96xf32, #tpu.memory_space<vmem>>, vector<32x96xf32>
    %cst_34 = arith.constant dense<0.000000e+00> : vector<32x96xf32>
    %32 = tpu.matmul %30, %31, %cst_34 {dimension_numbers = #tpu.dot_dimension_numbers<[1], [0], [0], [1], [0, 0, 1, 1], [], []>} : vector<32x32xf32>, vector<32x96xf32>, vector<32x96xf32> -> vector<32x96xf32>
    %33 = arith.addf %28, %32 : vector<32x96xf32>
    %c0_35 = arith.constant 0 : index
    %c11 = arith.constant 11 : index
    %c0_36 = arith.constant 0 : index
    %34 = vector.load %arg7[%c0_35, %c11, %c0_36] : memref<2x32x32xf32, #tpu.memory_space<vmem>>, vector<2x16x32xf32>
    %35 = vector.shape_cast %34 : vector<2x16x32xf32> to vector<32x32xf32>
    %c192 = arith.constant 192 : index
    %c0_37 = arith.constant 0 : index
    %36 = vector.load %arg2[%c192, %c0_37] : memref<224x96xf32, #tpu.memory_space<vmem>>, vector<32x96xf32>
    %cst_38 = arith.constant dense<0.000000e+00> : vector<32x96xf32>
    %37 = tpu.matmul %35, %36, %cst_38 {dimension_numbers = #tpu.dot_dimension_numbers<[1], [0], [0], [1], [0, 0, 1, 1], [], []>} : vector<32x32xf32>, vector<32x96xf32>, vector<32x96xf32> -> vector<32x96xf32>
    %38 = arith.addf %33, %37 : vector<32x96xf32>
    %c0_39 = arith.constant 0 : index
    %c0_40 = arith.constant 0 : index
    %39 = vector.load %arg3[%c0_39, %c0_40] : memref<3x96xf32, #tpu.memory_space<vmem>>, vector<1x96xf32>
    %40 = vector.broadcast %39 : vector<1x96xf32> to vector<32x96xf32>
    %41 = arith.addf %38, %40 : vector<32x96xf32>
    %42 = vector.shape_cast %41 : vector<32x96xf32> to vector<2x16x96xf32>
    %cst_41 = arith.constant dense<0.000000e+00> : vector<2x96xf32>
    %43 = vector.multi_reduction <add>, %42, %cst_41 [1] : vector<2x16x96xf32> to vector<2x96xf32>
    %44 = arith.mulf %42, %42 : vector<2x16x96xf32>
    %cst_42 = arith.constant dense<0.000000e+00> : vector<2x96xf32>
    %45 = vector.multi_reduction <add>, %44, %cst_42 [1] : vector<2x16x96xf32> to vector<2x96xf32>
    %c0_43 = arith.constant 0 : index
    %c0_44 = arith.constant 0 : index
    %46 = vector.load %arg5[%c0_43, %c0_44] : memref<96x96xf32, #tpu.memory_space<vmem>>, vector<96x96xf32>
    %cst_45 = arith.constant dense<0.000000e+00> : vector<2x96xf32>
    %47 = tpu.matmul %43, %46, %cst_45 {dimension_numbers = #tpu.dot_dimension_numbers<[1], [0], [0], [1], [0, 0, 1, 1], [], []>} : vector<2x96xf32>, vector<96x96xf32>, vector<2x96xf32> -> vector<2x96xf32>
    %c0_46 = arith.constant 0 : index
    %c0_47 = arith.constant 0 : index
    %48 = vector.load %arg5[%c0_46, %c0_47] : memref<96x96xf32, #tpu.memory_space<vmem>>, vector<96x96xf32>
    %cst_48 = arith.constant dense<0.000000e+00> : vector<2x96xf32>
    %49 = tpu.matmul %45, %48, %cst_48 {dimension_numbers = #tpu.dot_dimension_numbers<[1], [0], [0], [1], [0, 0, 1, 1], [], []>} : vector<2x96xf32>, vector<96x96xf32>, vector<2x96xf32> -> vector<2x96xf32>
    %50 = arith.mulf %47, %47 : vector<2x96xf32>
    %51 = arith.subf %49, %50 : vector<2x96xf32>
    %cst_49 = arith.constant 9.99999974E-6 : f32
    %52 = vector.broadcast %cst_49 : f32 to vector<2x96xf32>
    %53 = arith.addf %51, %52 : vector<2x96xf32>
    %54 = math.rsqrt %53 : vector<2x96xf32>
    %c1 = arith.constant 1 : index
    %c0_50 = arith.constant 0 : index
    %55 = vector.load %arg3[%c1, %c0_50] : memref<3x96xf32, #tpu.memory_space<vmem>>, vector<1x96xf32>
    %56 = vector.broadcast %55 : vector<1x96xf32> to vector<2x96xf32>
    %57 = arith.mulf %54, %56 : vector<2x96xf32>
    %c2 = arith.constant 2 : index
    %c0_51 = arith.constant 0 : index
    %58 = vector.load %arg3[%c2, %c0_51] : memref<3x96xf32, #tpu.memory_space<vmem>>, vector<1x96xf32>
    %59 = arith.mulf %47, %57 : vector<2x96xf32>
    %60 = vector.broadcast %58 : vector<1x96xf32> to vector<2x96xf32>
    %61 = arith.subf %60, %59 : vector<2x96xf32>
    %62 = vector.shape_cast %57 : vector<2x96xf32> to vector<2x1x96xf32>
    %63 = vector.broadcast %62 : vector<2x1x96xf32> to vector<2x16x96xf32>
    %64 = arith.mulf %42, %63 : vector<2x16x96xf32>
    %65 = vector.shape_cast %61 : vector<2x96xf32> to vector<2x1x96xf32>
    %66 = vector.broadcast %65 : vector<2x1x96xf32> to vector<2x16x96xf32>
    %67 = arith.addf %64, %66 : vector<2x16x96xf32>
    %cst_52 = arith.constant 0.000000e+00 : f32
    %68 = vector.broadcast %cst_52 : f32 to vector<2x16x96xf32>
    %69 = arith.maximumf %67, %68 : vector<2x16x96xf32>
    %70 = vector.shape_cast %69 : vector<2x16x96xf32> to vector<32x96xf32>
    %c0_53 = arith.constant 0 : index
    %c0_54 = arith.constant 0 : index
    %71 = vector.load %arg4[%c0_53, %c0_54] : memref<97x32xf32, #tpu.memory_space<vmem>>, vector<96x32xf32>
    %cst_55 = arith.constant dense<0.000000e+00> : vector<32x32xf32>
    %72 = tpu.matmul %70, %71, %cst_55 {dimension_numbers = #tpu.dot_dimension_numbers<[1], [0], [0], [1], [0, 0, 1, 1], [], []>} : vector<32x96xf32>, vector<96x32xf32>, vector<32x32xf32> -> vector<32x32xf32>
    %73 = vector.shape_cast %72 : vector<32x32xf32> to vector<2x16x32xf32>
    %c96_56 = arith.constant 96 : index
    %c0_57 = arith.constant 0 : index
    %74 = vector.load %arg4[%c96_56, %c0_57] : memref<97x32xf32, #tpu.memory_space<vmem>>, vector<1x32xf32>
    %75 = vector.shape_cast %74 : vector<1x32xf32> to vector<1x1x32xf32>
    %76 = vector.broadcast %75 : vector<1x1x32xf32> to vector<2x16x32xf32>
    %77 = arith.addf %73, %76 : vector<2x16x32xf32>
    %78 = arith.addf %77, %0 : vector<2x16x32xf32>
    %c0_58 = arith.constant 0 : index
    %c0_59 = arith.constant 0 : index
    %c0_60 = arith.constant 0 : index
    %79 = vector.load %arg6[%c0_58, %c0_59, %c0_60] : memref<2x16x32xf32, #tpu.memory_space<vmem>>, vector<2x16x32xf32>
    tpu.vector_store %arg6[%c0_58, %c0_59, %c0_60], %78 {strides = array<i32>} : memref<2x16x32xf32, #tpu.memory_space<vmem>>, vector<2x16x32xf32>,
    return
  }
  func.func @transform_0(%arg0: i32) -> (i32, i32, i32) {
    %c0_i32 = arith.constant 0 : i32
    %c0_i32_0 = arith.constant 0 : i32
    %c0_i32_1 = arith.constant 0 : i32
    return %arg0, %c0_i32, %c0_i32_0 : i32, i32, i32
  }
  func.func @transform_1(%arg0: i32) -> (i32, i32) {
    %c0_i32 = arith.constant 0 : i32
    %c0_i32_0 = arith.constant 0 : i32
    %c0_i32_1 = arith.constant 0 : i32
    return %c0_i32, %c0_i32_0 : i32, i32
  }
  func.func @transform_2(%arg0: i32) -> (i32, i32) {
    %c0_i32 = arith.constant 0 : i32
    %c0_i32_0 = arith.constant 0 : i32
    %c0_i32_1 = arith.constant 0 : i32
    return %c0_i32, %c0_i32_0 : i32, i32
  }
  func.func @transform_3(%arg0: i32) -> (i32, i32) {
    %c0_i32 = arith.constant 0 : i32
    %c0_i32_0 = arith.constant 0 : i32
    %c0_i32_1 = arith.constant 0 : i32
    return %c0_i32, %c0_i32_0 : i32, i32
  }
  func.func @transform_4(%arg0: i32) -> (i32, i32) {
    %c0_i32 = arith.constant 0 : i32
    %c0_i32_0 = arith.constant 0 : i32
    %c0_i32_1 = arith.constant 0 : i32
    return %c0_i32, %c0_i32_0 : i32, i32
  }
  func.func @transform_5(%arg0: i32) -> (i32, i32, i32) {
    %c0_i32 = arith.constant 0 : i32
    %c0_i32_0 = arith.constant 0 : i32
    %c0_i32_1 = arith.constant 0 : i32
    return %arg0, %c0_i32, %c0_i32_0 : i32, i32, i32
  }
}

</mosaic_0001>

<llo_original>
// kernel: tpu_custom_call.1
$region0: #{tpu_custom_call.1}
  #allocation0 [shape = 'u32[]', space=smem, size = 0x4, offset = 0x4, fixed_abs, tag = 'smem constant byte address 0x4 - core index']
  #allocation1 [shape = 'u32[144,128]{1,0:T(1,128)}', space=vmem, size = 0x12000, scoped, tag = 'internal scratch']
  #allocation2 [shape = 'f32[2,32,32]{2,1,0:T(8,128)}', space=vmem, size = 0x8000, scoped, tag = 'scratch operand']
  %s0 = inlined_call_operand.vmem [shape: f32[2,16,32], index: 0, kind: input, shape index: {}]
  %s1 = inlined_call_operand.vmem [shape: f32[224,96], index: 1, kind: input, shape index: {}]
  %s2 = inlined_call_operand.vmem [shape: f32[3,96], index: 2, kind: input, shape index: {}]
  %s3 = inlined_call_operand.vmem [shape: f32[97,32], index: 3, kind: input, shape index: {}]
  %s4 = inlined_call_operand.vmem [shape: f32[96,96], index: 4, kind: input, shape index: {}]
  %s5 = inlined_call_operand.hbm [shape: f32[2,16,32], index: 5, kind: output, shape index: {}]
  %s6 = sld [smem:[#allocation0]]
  $region30: #{tpu_custom_call.1} parent=0
    _
  %s8 = ssub.s32 1, %s6
  %s9 = scalar_select 0, %s8, %s6
  $region1: #{tpu_custom_call.1} parent=0
    #allocation3 [shape = 'u8[16384]{0}', space=vmem, size = 0x4000, scoped, tag = 'output window, operand 0, single buffered']
    #allocation4 [shape = 's32[1]{0}', space=sflag, size = 0x4, scoped, tag = 'scoped memory for tpu_custom_call.1']
    %10 = vsyncpa [#allocation4], 0
    // Predicated region
    $region2: #{tpu_custom_call.1} parent=1 // pred_check
      _
    $region3: #{tpu_custom_call.1} parent=1 // pred_check_branch
      %12 = sbr.rel (0) target = $region5
    $region4: #{tpu_custom_call.1} parent=1 // pred_region
      _
    $region5: #{tpu_custom_call.1} parent=1 // pred_fallthru
      _
    // Predicated region
    $region6: #{tpu_custom_call.1} parent=1 // pred_check
      _
    $region7: #{tpu_custom_call.1} parent=1 // pred_check_branch
      %14 = sbr.rel (0) target = $region9
    $region8: #{tpu_custom_call.1} parent=1 // pred_region
      _
    $region9: #{tpu_custom_call.1} parent=1 // pred_fallthru
      _
    // Predicated region
    $region10: #{tpu_custom_call.1} parent=1 // pred_check
      _
    $region11: #{tpu_custom_call.1} parent=1 // pred_check_branch
      %16 = sbr.rel (0) target = $region13
    $region12: #{tpu_custom_call.1} parent=1 // pred_region
      _
    $region13: #{tpu_custom_call.1} parent=1 // pred_fallthru
      _
    // Predicated region
    $region14: #{tpu_custom_call.1} parent=1 // pred_check
      _
    $region15: #{tpu_custom_call.1} parent=1 // pred_check_branch
      %18 = sbr.rel (0) target = $region17
    $region16: #{tpu_custom_call.1} parent=1 // pred_region
      _
    $region17: #{tpu_custom_call.1} parent=1 // pred_fallthru
      _
    // Predicated region
    $region18: #{tpu_custom_call.1} parent=1 // pred_check
      _
    $region19: #{tpu_custom_call.1} parent=1 // pred_check_branch
      %20 = sbr.rel (0) target = $region21
    $region20: #{tpu_custom_call.1} parent=1 // pred_region
      _
    $region21: #{tpu_custom_call.1} parent=1 // pred_fallthru
      _
    %v21 = vld [vmem:[%s0] sm:$0xff]
    %v22 = vld [vmem:[%s0 + $0x8] sm:$0xff]
    %v23 = vld [vmem:[%s0 + $0x10] sm:$0xff]
    %v24 = vld [vmem:[%s0 + $0x18] sm:$0xff]
    %vm25 = vcmask 261120
    %26 = vst.msk [vmem:[#allocation2] sm:$0xff] %vm25, 0.0
    %27 = vst.msk [vmem:[#allocation2 + $0x20] sm:$0xff] %vm25, 0.0
    %28 = vst.msk [vmem:[#allocation2 + $0x18] sm:$0xff] %vm25, 0.0
    %29 = vst.msk [vmem:[#allocation2 + $0x38] sm:$0xff] %vm25, 0.0
    %30 = vst.msk [vmem:[#allocation2 + $0x8] sm:$0xff] %vm25, %v21
    %31 = vst.msk [vmem:[#allocation2 + $0x10] sm:$0xff] %vm25, %v22
    %32 = vst.msk [vmem:[#allocation2 + $0x28] sm:$0xff] %vm25, %v23
    %33 = vst.msk [vmem:[#allocation2 + $0x30] sm:$0xff] %vm25, %v24
    %v34 = vld [vmem:[#allocation2 + $0x5] sm:$0xff]
    %v35 = vld [vmem:[#allocation2 + $0xd] sm:$0xff]
    %v36 = vld [vmem:[#allocation2 + $0x25] sm:$0xff]
    %v37 = vld [vmem:[#allocation2 + $0x2d] sm:$0xff]
    %v38 = vld [vmem:[%s1] sm:$0xff]
    %v39 = vld [vmem:[%s1 + $0x8] sm:$0xff]
    %v40 = vld [vmem:[%s1 + $0x10] sm:$0xff]
    %v41 = vld [vmem:[%s1 + $0x18] sm:$0xff]
    %v42 = vld [vmem:[#allocation2 + $0x6] sm:$0xff]
    %v43 = vld [vmem:[#allocation2 + $0xe] sm:$0xff]
    %v44 = vld [vmem:[#allocation2 + $0x26] sm:$0xff]
    %v45 = vld [vmem:[#allocation2 + $0x2e] sm:$0xff]
    %v46 = vld [vmem:[%s1 + $0x20] sm:$0xff]
    %v47 = vld [vmem:[%s1 + $0x28] sm:$0xff]
    %v48 = vld [vmem:[%s1 + $0x30] sm:$0xff]
    %v49 = vld [vmem:[%s1 + $0x38] sm:$0xff]
    %v51 = vsel %vm25, %v42, 0
    %v54 = vsel %vm25, %v43, 0
    %v57 = vsel %vm25, %v44, 0
    %v60 = vsel %vm25, %v45, 0
    %62 = vmatprep.subr.mxu0 0.0
    %63 = vmatpush1.msra.mxu0 0.0
    %64 = vmatprep.subr.mxu0 0.0
    %65 = vmatpush1.msra.mxu0 0.0
    %66 = vmatprep.subr.mxu0 0.0
    %67 = vmatpush1.msra.mxu0 0.0
    %68 = vmatprep.subr.mxu0 0.0
    %69 = vmatpush1.msra.mxu0 0.0
    %70 = vmatprep.subr.mxu0 0.0
    %71 = vmatpush1.msra.mxu0 0.0
    %72 = vmatprep.subr.mxu0 0.0
    %73 = vmatpush1.msra.mxu0 0.0
    %74 = vmatprep.subr.mxu0 0.0
    %75 = vmatpush1.msra.mxu0 0.0
    %76 = vmatprep.subr.mxu0 0.0
    %77 = vmatpush1.msra.mxu0 0.0
    %78 = vmatprep.subr.mxu0 0.0
    %79 = vmatpush1.msra.mxu0 0.0
    %80 = vmatprep.subr.mxu0 0.0
    %81 = vmatpush1.msra.mxu0 0.0
    %82 = vmatprep.subr.mxu0 0.0
    %83 = vmatpush1.msra.mxu0 0.0
    %84 = vmatprep.subr.mxu0 0.0
    %85 = vmatpush1.msra.mxu0 0.0
    %86 = vmatprep.subr.mxu0 0.0
    %87 = vmatpush1.msra.mxu0 %v49
    %88 = vmatprep.subr.mxu0 0.0
    %89 = vmatpush1.msra.mxu0 %v48
    %90 = vmatprep.subr.mxu0 0.0
    %91 = vmatpush1.msra.mxu0 %v47
    %92 = vmatprep.subr.mxu0 0.0
    %93 = vmatpush1.msra.mxu0 %v46
    %94 = vmatprep.subr.mxu0 0.0
    %95 = vmatpush2.msra.mxu0 0.0
    %96 = vmatprep.subr.mxu0 0.0
    %97 = vmatpush2.msra.mxu0 0.0
    %98 = vmatprep.subr.mxu0 0.0
    %99 = vmatpush2.msra.mxu0 0.0
    %100 = vmatprep.subr.mxu0 0.0
    %101 = vmatpush2.msra.mxu0 0.0
    %102 = vmatprep.subr.mxu0 0.0
    %103 = vmatpush2.msra.mxu0 0.0
    %104 = vmatprep.subr.mxu0 0.0
    %105 = vmatpush2.msra.mxu0 0.0
    %106 = vmatprep.subr.mxu0 0.0
    %107 = vmatpush2.msra.mxu0 0.0
    %108 = vmatprep.subr.mxu0 0.0
    %109 = vmatpush2.msra.mxu0 0.0
    %110 = vmatprep.subr.mxu0 0.0
    %111 = vmatpush2.msra.mxu0 0.0
    %112 = vmatprep.subr.mxu0 0.0
    %113 = vmatpush2.msra.mxu0 0.0
    %114 = vmatprep.subr.mxu0 0.0
    %115 = vmatpush2.msra.mxu0 0.0
    %116 = vmatprep.subr.mxu0 0.0
    %117 = vmatpush2.msra.mxu0 0.0
    %118 = vmatprep.subr.mxu0 0.0
    %119 = vmatpush2.msra.mxu0 0.0
    %120 = vmatprep.subr.mxu0 0.0
    %121 = vmatpush2.msra.mxu0 0.0
    %122 = vmatprep.subr.mxu0 0.0
    %123 = vmatpush2.msra.mxu0 0.0
    %124 = vmatprep.subr.mxu0 0.0
    %125 = vmatpush2.msra.mxu0 0.0
    %126 = vmatprep.mubr.f32.mxu0 0.0
    %127 = vmatmul.mubr.f32.gmra.mxu0 %v51
    %v128 = vpop.f32.mrf.mxu0
    %v129 = vadd.f32 0.0, %v128
    %v130 = vpop.f32.mrf.mxu0
    %131 = vmatprep.mubr.f32.mxu0 0.0
    %132 = vmatmul.mubr.f32.gmra.mxu0 %v54
    %v133 = vpop.f32.mrf.mxu0
    %v134 = vadd.f32 0.0, %v133
    %v135 = vpop.f32.mrf.mxu0
    %136 = vmatprep.mubr.f32.mxu0 0.0
    %137 = vmatmul.mubr.f32.gmra.mxu0 %v57
    %v138 = vpop.f32.mrf.mxu0
    %v139 = vadd.f32 0.0, %v138
    %v140 = vpop.f32.mrf.mxu0
    %141 = vmatprep.mubr.f32.mxu0 0.0
    %142 = vmatmul.mubr.f32.gmra.mxu0 %v60
    %v143 = vpop.f32.mrf.mxu0
    %v144 = vadd.f32 0.0, %v143
    %v145 = vpop.f32.mrf.mxu0
    %146 = vdwg.mxu0
    %v148 = vsel %vm25, %v34, 0
    %v151 = vsel %vm25, %v35, 0
    %v154 = vsel %vm25, %v36, 0
    %v157 = vsel %vm25, %v37, 0
    %159 = vmatprep.subr.mxu0 0.0
    %160 = vmatpush1.msra.mxu0 0.0
    %161 = vmatprep.subr.mxu0 0.0
    %162 = vmatpush1.msra.mxu0 0.0
    %163 = vmatprep.subr.mxu0 0.0
    %164 = vmatpush1.msra.mxu0 0.0
    %165 = vmatprep.subr.mxu0 0.0
    %166 = vmatpush1.msra.mxu0 0.0
    %167 = vmatprep.subr.mxu0 0.0
    %168 = vmatpush1.msra.mxu0 0.0
    %169 = vmatprep.subr.mxu0 0.0
    %170 = vmatpush1.msra.mxu0 0.0
    %171 = vmatprep.subr.mxu0 0.0
    %172 = vmatpush1.msra.mxu0 0.0
    %173 = vmatprep.subr.mxu0 0.0
    %174 = vmatpush1.msra.mxu0 0.0
    %175 = vmatprep.subr.mxu0 0.0
    %176 = vmatpush1.msra.mxu0 0.0
    %177 = vmatprep.subr.mxu0 0.0
    %178 = vmatpush1.msra.mxu0 0.0
    %179 = vmatprep.subr.mxu0 0.0
    %180 = vmatpush1.msra.mxu0 0.0
    %181 = vmatprep.subr.mxu0 0.0
    %182 = vmatpush1.msra.mxu0 0.0
    %183 = vmatprep.subr.mxu0 0.0
    %184 = vmatpush1.msra.mxu0 %v41
    %185 = vmatprep.subr.mxu0 0.0
    %186 = vmatpush1.msra.mxu0 %v40
    %187 = vmatprep.subr.mxu0 0.0
    %188 = vmatpush1.msra.mxu0 %v39
    %189 = vmatprep.subr.mxu0 0.0
    %190 = vmatpush1.msra.mxu0 %v38
    %191 = vmatprep.subr.mxu0 0.0
    %192 = vmatpush2.msra.mxu0 0.0
    %193 = vmatprep.subr.mxu0 0.0
    %194 = vmatpush2.msra.mxu0 0.0
    %195 = vmatprep.subr.mxu0 0.0
    %196 = vmatpush2.msra.mxu0 0.0
    %197 = vmatprep.subr.mxu0 0.0
    %198 = vmatpush2.msra.mxu0 0.0
    %199 = vmatprep.subr.mxu0 0.0
    %200 = vmatpush2.msra.mxu0 0.0
    %201 = vmatprep.subr.mxu0 0.0
    %202 = vmatpush2.msra.mxu0 0.0
    %203 = vmatprep.subr.mxu0 0.0
    %204 = vmatpush2.msra.mxu0 0.0
    %205 = vmatprep.subr.mxu0 0.0
    %206 = vmatpush2.msra.mxu0 0.0
    %207 = vmatprep.subr.mxu0 0.0
    %208 = vmatpush2.msra.mxu0 0.0
    %209 = vmatprep.subr.mxu0 0.0
    %210 = vmatpush2.msra.mxu0 0.0
    %211 = vmatprep.subr.mxu0 0.0
    %212 = vmatpush2.msra.mxu0 0.0
    %213 = vmatprep.subr.mxu0 0.0
    %214 = vmatpush2.msra.mxu0 0.0
    %215 = vmatprep.subr.mxu0 0.0
    %216 = vmatpush2.msra.mxu0 0.0
    %217 = vmatprep.subr.mxu0 0.0
    %218 = vmatpush2.msra.mxu0 0.0
    %219 = vmatprep.subr.mxu0 0.0
    %220 = vmatpush2.msra.mxu0 0.0
    %221 = vmatprep.subr.mxu0 0.0
    %222 = vmatpush2.msra.mxu0 0.0
    %223 = vmatprep.mubr.f32.mxu0 0.0
    %224 = vmatmul.mubr.f32.gmra.mxu0 %v148
    %v225 = vpop.f32.mrf.mxu0
    %v226 = vadd.f32 %v129, %v225
    %v227 = vpop.f32.mrf.mxu0
    %228 = vmatprep.mubr.f32.mxu0 0.0
    %229 = vmatmul.mubr.f32.gmra.mxu0 %v151
    %v230 = vpop.f32.mrf.mxu0
    %v231 = vadd.f32 %v134, %v230
    %v232 = vpop.f32.mrf.mxu0
    %233 = vmatprep.mubr.f32.mxu0 0.0
    %234 = vmatmul.mubr.f32.gmra.mxu0 %v154
    %v235 = vpop.f32.mrf.mxu0
    %v236 = vadd.f32 %v139, %v235
    %v237 = vpop.f32.mrf.mxu0
    %238 = vmatprep.mubr.f32.mxu0 0.0
    %239 = vmatmul.mubr.f32.gmra.mxu0 %v157
    %v240 = vpop.f32.mrf.mxu0
    %v241 = vadd.f32 %v144, %v240
    %v242 = vpop.f32.mrf.mxu0
    %243 = vdwg.mxu0
    %v244 = vld [vmem:[#allocation2 + $0x7] sm:$0xff]
    %v245 = vld [vmem:[#allocation2 + $0xf] sm:$0xff]
    %v246 = vld [vmem:[#allocation2 + $0x27] sm:$0xff]
    %v247 = vld [vmem:[#allocation2 + $0x2f] sm:$0xff]
    %v248 = vld [vmem:[%s1 + $0x40] sm:$0xff]
    %v249 = vld [vmem:[%s1 + $0x48] sm:$0xff]
    %v250 = vld [vmem:[%s1 + $0x50] sm:$0xff]
    %v251 = vld [vmem:[%s1 + $0x58] sm:$0xff]
    %v253 = vsel %vm25, %v244, 0
    %v256 = vsel %vm25, %v245, 0
    %v259 = vsel %vm25, %v246, 0
    %v262 = vsel %vm25, %v247, 0
    %264 = vmatprep.subr.mxu0 0.0
    %265 = vmatpush1.msra.mxu0 0.0
    %266 = vmatprep.subr.mxu0 0.0
    %267 = vmatpush1.msra.mxu0 0.0
    %268 = vmatprep.subr.mxu0 0.0
    %269 = vmatpush1.msra.mxu0 0.0
    %270 = vmatprep.subr.mxu0 0.0
    %271 = vmatpush1.msra.mxu0 0.0
    %272 = vmatprep.subr.mxu0 0.0
    %273 = vmatpush1.msra.mxu0 0.0
    %274 = vmatprep.subr.mxu0 0.0
    %275 = vmatpush1.msra.mxu0 0.0
    %276 = vmatprep.subr.mxu0 0.0
    %277 = vmatpush1.msra.mxu0 0.0
    %278 = vmatprep.subr.mxu0 0.0
    %279 = vmatpush1.msra.mxu0 0.0
    %280 = vmatprep.subr.mxu0 0.0
    %281 = vmatpush1.msra.mxu0 0.0
    %282 = vmatprep.subr.mxu0 0.0
    %283 = vmatpush1.msra.mxu0 0.0
    %284 = vmatprep.subr.mxu0 0.0
    %285 = vmatpush1.msra.mxu0 0.0
    %286 = vmatprep.subr.mxu0 0.0
    %287 = vmatpush1.msra.mxu0 0.0
    %288 = vmatprep.subr.mxu0 0.0
    %289 = vmatpush1.msra.mxu0 %v251
    %290 = vmatprep.subr.mxu0 0.0
    %291 = vmatpush1.msra.mxu0 %v250
    %292 = vmatprep.subr.mxu0 0.0
    %293 = vmatpush1.msra.mxu0 %v249
    %294 = vmatprep.subr.mxu0 0.0
    %295 = vmatpush1.msra.mxu0 %v248
    %296 = vmatprep.subr.mxu0 0.0
    %297 = vmatpush2.msra.mxu0 0.0
    %298 = vmatprep.subr.mxu0 0.0
    %299 = vmatpush2.msra.mxu0 0.0
    %300 = vmatprep.subr.mxu0 0.0
    %301 = vmatpush2.msra.mxu0 0.0
    %302 = vmatprep.subr.mxu0 0.0
    %303 = vmatpush2.msra.mxu0 0.0
    %304 = vmatprep.subr.mxu0 0.0
    %305 = vmatpush2.msra.mxu0 0.0
    %306 = vmatprep.subr.mxu0 0.0
    %307 = vmatpush2.msra.mxu0 0.0
    %308 = vmatprep.subr.mxu0 0.0
    %309 = vmatpush2.msra.mxu0 0.0
    %310 = vmatprep.subr.mxu0 0.0
    %311 = vmatpush2.msra.mxu0 0.0
    %312 = vmatprep.subr.mxu0 0.0
    %313 = vmatpush2.msra.mxu0 0.0
    %314 = vmatprep.subr.mxu0 0.0
    %315 = vmatpush2.msra.mxu0 0.0
    %316 = vmatprep.subr.mxu0 0.0
    %317 = vmatpush2.msra.mxu0 0.0
    %318 = vmatprep.subr.mxu0 0.0
    %319 = vmatpush2.msra.mxu0 0.0
    %320 = vmatprep.subr.mxu0 0.0
    %321 = vmatpush2.msra.mxu0 0.0
    %322 = vmatprep.subr.mxu0 0.0
    %323 = vmatpush2.msra.mxu0 0.0
    %324 = vmatprep.subr.mxu0 0.0
    %325 = vmatpush2.msra.mxu0 0.0
    %326 = vmatprep.subr.mxu0 0.0
    %327 = vmatpush2.msra.mxu0 0.0
    %328 = vmatprep.mubr.f32.mxu0 0.0
    %329 = vmatmul.mubr.f32.gmra.mxu0 %v253
    %v330 = vpop.f32.mrf.mxu0
    %v331 = vadd.f32 0.0, %v330
    %v332 = vpop.f32.mrf.mxu0
    %333 = vmatprep.mubr.f32.mxu0 0.0
    %334 = vmatmul.mubr.f32.gmra.mxu0 %v256
    %v335 = vpop.f32.mrf.mxu0
    %v336 = vadd.f32 0.0, %v335
    %v337 = vpop.f32.mrf.mxu0
    %338 = vmatprep.mubr.f32.mxu0 0.0
    %339 = vmatmul.mubr.f32.gmra.mxu0 %v259
    %v340 = vpop.f32.mrf.mxu0
    %v341 = vadd.f32 0.0, %v340
    %v342 = vpop.f32.mrf.mxu0
    %343 = vmatprep.mubr.f32.mxu0 0.0
    %344 = vmatmul.mubr.f32.gmra.mxu0 %v262
    %v345 = vpop.f32.mrf.mxu0
    %v346 = vadd.f32 0.0, %v345
    %v347 = vpop.f32.mrf.mxu0
    %348 = vdwg.mxu0
    %v349 = vadd.f32 %v226, %v331
    %v350 = vadd.f32 %v231, %v336
    %v351 = vadd.f32 %v236, %v341
    %v352 = vadd.f32 %v241, %v346
    %v353 = vld [vmem:[#allocation2 + $0x8] sm:$0xff]
    %v354 = vld [vmem:[#allocation2 + $0x10] sm:$0xff]
    %v355 = vld [vmem:[#allocation2 + $0x28] sm:$0xff]
    %v356 = vld [vmem:[#allocation2 + $0x30] sm:$0xff]
    %v357 = vld [vmem:[%s1 + $0x60] sm:$0xff]
    %v358 = vld [vmem:[%s1 + $0x68] sm:$0xff]
    %v359 = vld [vmem:[%s1 + $0x70] sm:$0xff]
    %v360 = vld [vmem:[%s1 + $0x78] sm:$0xff]
    %v362 = vsel %vm25, %v353, 0
    %v365 = vsel %vm25, %v354, 0
    %v368 = vsel %vm25, %v355, 0
    %v371 = vsel %vm25, %v356, 0
    %373 = vmatprep.subr.mxu0 0.0
    %374 = vmatpush1.msra.mxu0 0.0
    %375 = vmatprep.subr.mxu0 0.0
    %376 = vmatpush1.msra.mxu0 0.0
    %377 = vmatprep.subr.mxu0 0.0
    %378 = vmatpush1.msra.mxu0 0.0
    %379 = vmatprep.subr.mxu0 0.0
    %380 = vmatpush1.msra.mxu0 0.0
    %381 = vmatprep.subr.mxu0 0.0
    %382 = vmatpush1.msra.mxu0 0.0
    %383 = vmatprep.subr.mxu0 0.0
    %384 = vmatpush1.msra.mxu0 0.0
    %385 = vmatprep.subr.mxu0 0.0
    %386 = vmatpush1.msra.mxu0 0.0
    %387 = vmatprep.subr.mxu0 0.0
    %388 = vmatpush1.msra.mxu0 0.0
    %389 = vmatprep.subr.mxu0 0.0
    %390 = vmatpush1.msra.mxu0 0.0
    %391 = vmatprep.subr.mxu0 0.0
    %392 = vmatpush1.msra.mxu0 0.0
    %393 = vmatprep.subr.mxu0 0.0
    %394 = vmatpush1.msra.mxu0 0.0
    %395 = vmatprep.subr.mxu0 0.0
    %396 = vmatpush1.msra.mxu0 0.0
    %397 = vmatprep.subr.mxu0 0.0
    %398 = vmatpush1.msra.mxu0 %v360
    %399 = vmatprep.subr.mxu0 0.0
    %400 = vmatpush1.msra.mxu0 %v359
    %401 = vmatprep.subr.mxu0 0.0
    %402 = vmatpush1.msra.mxu0 %v358
    %403 = vmatprep.subr.mxu0 0.0
    %404 = vmatpush1.msra.mxu0 %v357
    %405 = vmatprep.subr.mxu0 0.0
    %406 = vmatpush2.msra.mxu0 0.0
    %407 = vmatprep.subr.mxu0 0.0
    %408 = vmatpush2.msra.mxu0 0.0
    %409 = vmatprep.subr.mxu0 0.0
    %410 = vmatpush2.msra.mxu0 0.0
    %411 = vmatprep.subr.mxu0 0.0
    %412 = vmatpush2.msra.mxu0 0.0
    %413 = vmatprep.subr.mxu0 0.0
    %414 = vmatpush2.msra.mxu0 0.0
    %415 = vmatprep.subr.mxu0 0.0
    %416 = vmatpush2.msra.mxu0 0.0
    %417 = vmatprep.subr.mxu0 0.0
    %418 = vmatpush2.msra.mxu0 0.0
    %419 = vmatprep.subr.mxu0 0.0
    %420 = vmatpush2.msra.mxu0 0.0
    %421 = vmatprep.subr.mxu0 0.0
    %422 = vmatpush2.msra.mxu0 0.0
    %423 = vmatprep.subr.mxu0 0.0
    %424 = vmatpush2.msra.mxu0 0.0
    %425 = vmatprep.subr.mxu0 0.0
    %426 = vmatpush2.msra.mxu0 0.0
    %427 = vmatprep.subr.mxu0 0.0
    %428 = vmatpush2.msra.mxu0 0.0
    %429 = vmatprep.subr.mxu0 0.0
    %430 = vmatpush2.msra.mxu0 0.0
    %431 = vmatprep.subr.mxu0 0.0
    %432 = vmatpush2.msra.mxu0 0.0
    %433 = vmatprep.subr.mxu0 0.0
    %434 = vmatpush2.msra.mxu0 0.0
    %435 = vmatprep.subr.mxu0 0.0
    %436 = vmatpush2.msra.mxu0 0.0
    %437 = vmatprep.mubr.f32.mxu0 0.0
    %438 = vmatmul.mubr.f32.gmra.mxu0 %v362
    %v439 = vpop.f32.mrf.mxu0
    %v440 = vadd.f32 0.0, %v439
    %v441 = vpop.f32.mrf.mxu0
    %442 = vmatprep.mubr.f32.mxu0 0.0
    %443 = vmatmul.mubr.f32.gmra.mxu0 %v365
    %v444 = vpop.f32.mrf.mxu0
    %v445 = vadd.f32 0.0, %v444
    %v446 = vpop.f32.mrf.mxu0
    %447 = vmatprep.mubr.f32.mxu0 0.0
    %448 = vmatmul.mubr.f32.gmra.mxu0 %v368
    %v449 = vpop.f32.mrf.mxu0
    %v450 = vadd.f32 0.0, %v449
    %v451 = vpop.f32.mrf.mxu0
    %452 = vmatprep.mubr.f32.mxu0 0.0
    %453 = vmatmul.mubr.f32.gmra.mxu0 %v371
    %v454 = vpop.f32.mrf.mxu0
    %v455 = vadd.f32 0.0, %v454
    %v456 = vpop.f32.mrf.mxu0
    %457 = vdwg.mxu0
    %v458 = vadd.f32 %v349, %v440
    %v459 = vadd.f32 %v350, %v445
    %v460 = vadd.f32 %v351, %v450
    %v461 = vadd.f32 %v352, %v455
    %v462 = vld [vmem:[#allocation2 + $0x9] sm:$0xff]
    %v463 = vld [vmem:[#allocation2 + $0x11] sm:$0xff]
    %v464 = vld [vmem:[#allocation2 + $0x29] sm:$0xff]
    %v465 = vld [vmem:[#allocation2 + $0x31] sm:$0xff]
    %v466 = vld [vmem:[%s1 + $0x80] sm:$0xff]
    %v467 = vld [vmem:[%s1 + $0x88] sm:$0xff]
    %v468 = vld [vmem:[%s1 + $0x90] sm:$0xff]
    %v469 = vld [vmem:[%s1 + $0x98] sm:$0xff]
    %v471 = vsel %vm25, %v462, 0
    %v474 = vsel %vm25, %v463, 0
    %v477 = vsel %vm25, %v464, 0
    %v480 = vsel %vm25, %v465, 0
    %482 = vmatprep.subr.mxu0 0.0
    %483 = vmatpush1.msra.mxu0 0.0
    %484 = vmatprep.subr.mxu0 0.0
    %485 = vmatpush1.msra.mxu0 0.0
    %486 = vmatprep.subr.mxu0 0.0
    %487 = vmatpush1.msra.mxu0 0.0
    %488 = vmatprep.subr.mxu0 0.0
    %489 = vmatpush1.msra.mxu0 0.0
    %490 = vmatprep.subr.mxu0 0.0
    %491 = vmatpush1.msra.mxu0 0.0
    %492 = vmatprep.subr.mxu0 0.0
    %493 = vmatpush1.msra.mxu0 0.0
    %494 = vmatprep.subr.mxu0 0.0
    %495 = vmatpush1.msra.mxu0 0.0
    %496 = vmatprep.subr.mxu0 0.0
    %497 = vmatpush1.msra.mxu0 0.0
    %498 = vmatprep.subr.mxu0 0.0
    %499 = vmatpush1.msra.mxu0 0.0
    %500 = vmatprep.subr.mxu0 0.0
    %501 = vmatpush1.msra.mxu0 0.0
    %502 = vmatprep.subr.mxu0 0.0
    %503 = vmatpush1.msra.mxu0 0.0
    %504 = vmatprep.subr.mxu0 0.0
    %505 = vmatpush1.msra.mxu0 0.0
    %506 = vmatprep.subr.mxu0 0.0
    %507 = vmatpush1.msra.mxu0 %v469
    %508 = vmatprep.subr.mxu0 0.0
    %509 = vmatpush1.msra.mxu0 %v468
    %510 = vmatprep.subr.mxu0 0.0
    %511 = vmatpush1.msra.mxu0 %v467
    %512 = vmatprep.subr.mxu0 0.0
    %513 = vmatpush1.msra.mxu0 %v466
    %514 = vmatprep.subr.mxu0 0.0
    %515 = vmatpush2.msra.mxu0 0.0
    %516 = vmatprep.subr.mxu0 0.0
    %517 = vmatpush2.msra.mxu0 0.0
    %518 = vmatprep.subr.mxu0 0.0
    %519 = vmatpush2.msra.mxu0 0.0
    %520 = vmatprep.subr.mxu0 0.0
    %521 = vmatpush2.msra.mxu0 0.0
    %522 = vmatprep.subr.mxu0 0.0
    %523 = vmatpush2.msra.mxu0 0.0
    %524 = vmatprep.subr.mxu0 0.0
    %525 = vmatpush2.msra.mxu0 0.0
    %526 = vmatprep.subr.mxu0 0.0
    %527 = vmatpush2.msra.mxu0 0.0
    %528 = vmatprep.subr.mxu0 0.0
    %529 = vmatpush2.msra.mxu0 0.0
    %530 = vmatprep.subr.mxu0 0.0
    %531 = vmatpush2.msra.mxu0 0.0
    %532 = vmatprep.subr.mxu0 0.0
    %533 = vmatpush2.msra.mxu0 0.0
    %534 = vmatprep.subr.mxu0 0.0
    %535 = vmatpush2.msra.mxu0 0.0
    %536 = vmatprep.subr.mxu0 0.0
    %537 = vmatpush2.msra.mxu0 0.0
    %538 = vmatprep.subr.mxu0 0.0
    %539 = vmatpush2.msra.mxu0 0.0
    %540 = vmatprep.subr.mxu0 0.0
    %541 = vmatpush2.msra.mxu0 0.0
    %542 = vmatprep.subr.mxu0 0.0
    %543 = vmatpush2.msra.mxu0 0.0
    %544 = vmatprep.subr.mxu0 0.0
    %545 = vmatpush2.msra.mxu0 0.0
    %546 = vmatprep.mubr.f32.mxu0 0.0
    %547 = vmatmul.mubr.f32.gmra.mxu0 %v471
    %v548 = vpop.f32.mrf.mxu0
    %v549 = vadd.f32 0.0, %v548
    %v550 = vpop.f32.mrf.mxu0
    %551 = vmatprep.mubr.f32.mxu0 0.0
    %552 = vmatmul.mubr.f32.gmra.mxu0 %v474
    %v553 = vpop.f32.mrf.mxu0
    %v554 = vadd.f32 0.0, %v553
    %v555 = vpop.f32.mrf.mxu0
    %556 = vmatprep.mubr.f32.mxu0 0.0
    %557 = vmatmul.mubr.f32.gmra.mxu0 %v477
    %v558 = vpop.f32.mrf.mxu0
    %v559 = vadd.f32 0.0, %v558
    %v560 = vpop.f32.mrf.mxu0
    %561 = vmatprep.mubr.f32.mxu0 0.0
    %562 = vmatmul.mubr.f32.gmra.mxu0 %v480
    %v563 = vpop.f32.mrf.mxu0
    %v564 = vadd.f32 0.0, %v563
    %v565 = vpop.f32.mrf.mxu0
    %566 = vdwg.mxu0
    %v567 = vadd.f32 %v458, %v549
    %v568 = vadd.f32 %v459, %v554
    %v569 = vadd.f32 %v460, %v559
    %v570 = vadd.f32 %v461, %v564
    %v571 = vld [vmem:[#allocation2 + $0xa] sm:$0xff]
    %v572 = vld [vmem:[#allocation2 + $0x12] sm:$0xff]
    %v573 = vld [vmem:[#allocation2 + $0x2a] sm:$0xff]
    %v574 = vld [vmem:[#allocation2 + $0x32] sm:$0xff]
    %v575 = vld [vmem:[%s1 + $0xa0] sm:$0xff]
    %v576 = vld [vmem:[%s1 + $0xa8] sm:$0xff]
    %v577 = vld [vmem:[%s1 + $0xb0] sm:$0xff]
    %v578 = vld [vmem:[%s1 + $0xb8] sm:$0xff]
    %v580 = vsel %vm25, %v571, 0
    %v583 = vsel %vm25, %v572, 0
    %v586 = vsel %vm25, %v573, 0
    %v589 = vsel %vm25, %v574, 0
    %591 = vmatprep.subr.mxu0 0.0
    %592 = vmatpush1.msra.mxu0 0.0
    %593 = vmatprep.subr.mxu0 0.0
    %594 = vmatpush1.msra.mxu0 0.0
    %595 = vmatprep.subr.mxu0 0.0
    %596 = vmatpush1.msra.mxu0 0.0
    %597 = vmatprep.subr.mxu0 0.0
    %598 = vmatpush1.msra.mxu0 0.0
    %599 = vmatprep.subr.mxu0 0.0
    %600 = vmatpush1.msra.mxu0 0.0
    %601 = vmatprep.subr.mxu0 0.0
    %602 = vmatpush1.msra.mxu0 0.0
    %603 = vmatprep.subr.mxu0 0.0
    %604 = vmatpush1.msra.mxu0 0.0
    %605 = vmatprep.subr.mxu0 0.0
    %606 = vmatpush1.msra.mxu0 0.0
    %607 = vmatprep.subr.mxu0 0.0
    %608 = vmatpush1.msra.mxu0 0.0
    %609 = vmatprep.subr.mxu0 0.0
    %610 = vmatpush1.msra.mxu0 0.0
    %611 = vmatprep.subr.mxu0 0.0
    %612 = vmatpush1.msra.mxu0 0.0
    %613 = vmatprep.subr.mxu0 0.0
    %614 = vmatpush1.msra.mxu0 0.0
    %615 = vmatprep.subr.mxu0 0.0
    %616 = vmatpush1.msra.mxu0 %v578
    %617 = vmatprep.subr.mxu0 0.0
    %618 = vmatpush1.msra.mxu0 %v577
    %619 = vmatprep.subr.mxu0 0.0
    %620 = vmatpush1.msra.mxu0 %v576
    %621 = vmatprep.subr.mxu0 0.0
    %622 = vmatpush1.msra.mxu0 %v575
    %623 = vmatprep.subr.mxu0 0.0
    %624 = vmatpush2.msra.mxu0 0.0
    %625 = vmatprep.subr.mxu0 0.0
    %626 = vmatpush2.msra.mxu0 0.0
    %627 = vmatprep.subr.mxu0 0.0
    %628 = vmatpush2.msra.mxu0 0.0
    %629 = vmatprep.subr.mxu0 0.0
    %630 = vmatpush2.msra.mxu0 0.0
    %631 = vmatprep.subr.mxu0 0.0
    %632 = vmatpush2.msra.mxu0 0.0
    %633 = vmatprep.subr.mxu0 0.0
    %634 = vmatpush2.msra.mxu0 0.0
    %635 = vmatprep.subr.mxu0 0.0
    %636 = vmatpush2.msra.mxu0 0.0
    %637 = vmatprep.subr.mxu0 0.0
    %638 = vmatpush2.msra.mxu0 0.0
    %639 = vmatprep.subr.mxu0 0.0
    %640 = vmatpush2.msra.mxu0 0.0
    %641 = vmatprep.subr.mxu0 0.0
    %642 = vmatpush2.msra.mxu0 0.0
    %643 = vmatprep.subr.mxu0 0.0
    %644 = vmatpush2.msra.mxu0 0.0
    %645 = vmatprep.subr.mxu0 0.0
    %646 = vmatpush2.msra.mxu0 0.0
    %647 = vmatprep.subr.mxu0 0.0
    %648 = vmatpush2.msra.mxu0 0.0
    %649 = vmatprep.subr.mxu0 0.0
    %650 = vmatpush2.msra.mxu0 0.0
    %651 = vmatprep.subr.mxu0 0.0
    %652 = vmatpush2.msra.mxu0 0.0
    %653 = vmatprep.subr.mxu0 0.0
    %654 = vmatpush2.msra.mxu0 0.0
    %655 = vmatprep.mubr.f32.mxu0 0.0
    %656 = vmatmul.mubr.f32.gmra.mxu0 %v580
    %v657 = vpop.f32.mrf.mxu0
    %v658 = vadd.f32 0.0, %v657
    %v659 = vpop.f32.mrf.mxu0
    %660 = vmatprep.mubr.f32.mxu0 0.0
    %661 = vmatmul.mubr.f32.gmra.mxu0 %v583
    %v662 = vpop.f32.mrf.mxu0
    %v663 = vadd.f32 0.0, %v662
    %v664 = vpop.f32.mrf.mxu0
    %665 = vmatprep.mubr.f32.mxu0 0.0
    %666 = vmatmul.mubr.f32.gmra.mxu0 %v586
    %v667 = vpop.f32.mrf.mxu0
    %v668 = vadd.f32 0.0, %v667
    %v669 = vpop.f32.mrf.mxu0
    %670 = vmatprep.mubr.f32.mxu0 0.0
    %671 = vmatmul.mubr.f32.gmra.mxu0 %v589
    %v672 = vpop.f32.mrf.mxu0
    %v673 = vadd.f32 0.0, %v672
    %v674 = vpop.f32.mrf.mxu0
    %675 = vdwg.mxu0
    %v676 = vadd.f32 %v567, %v658
    %v677 = vadd.f32 %v568, %v663
    %v678 = vadd.f32 %v569, %v668
    %v679 = vadd.f32 %v570, %v673
    %v680 = vld [vmem:[#allocation2 + $0xb] sm:$0xff]
    %v681 = vld [vmem:[#allocation2 + $0x13] sm:$0xff]
    %v682 = vld [vmem:[#allocation2 + $0x2b] sm:$0xff]
    %v683 = vld [vmem:[#allocation2 + $0x33] sm:$0xff]
    %v684 = vld [vmem:[%s1 + $0xc0] sm:$0xff]
    %v685 = vld [vmem:[%s1 + $0xc8] sm:$0xff]
    %v686 = vld [vmem:[%s1 + $0xd0] sm:$0xff]
    %v687 = vld [vmem:[%s1 + $0xd8] sm:$0xff]
    %v689 = vsel %vm25, %v680, 0
    %v692 = vsel %vm25, %v681, 0
    %v695 = vsel %vm25, %v682, 0
    %v698 = vsel %vm25, %v683, 0
    %700 = vmatprep.subr.mxu0 0.0
    %701 = vmatpush1.msra.mxu0 0.0
    %702 = vmatprep.subr.mxu0 0.0
    %703 = vmatpush1.msra.mxu0 0.0
    %704 = vmatprep.subr.mxu0 0.0
    %705 = vmatpush1.msra.mxu0 0.0
    %706 = vmatprep.subr.mxu0 0.0
    %707 = vmatpush1.msra.mxu0 0.0
    %708 = vmatprep.subr.mxu0 0.0
    %709 = vmatpush1.msra.mxu0 0.0
    %710 = vmatprep.subr.mxu0 0.0
    %711 = vmatpush1.msra.mxu0 0.0
    %712 = vmatprep.subr.mxu0 0.0
    %713 = vmatpush1.msra.mxu0 0.0
    %714 = vmatprep.subr.mxu0 0.0
    %715 = vmatpush1.msra.mxu0 0.0
    %716 = vmatprep.subr.mxu0 0.0
    %717 = vmatpush1.msra.mxu0 0.0
    %718 = vmatprep.subr.mxu0 0.0
    %719 = vmatpush1.msra.mxu0 0.0
    %720 = vmatprep.subr.mxu0 0.0
    %721 = vmatpush1.msra.mxu0 0.0
    %722 = vmatprep.subr.mxu0 0.0
    %723 = vmatpush1.msra.mxu0 0.0
    %724 = vmatprep.subr.mxu0 0.0
    %725 = vmatpush1.msra.mxu0 %v687
    %726 = vmatprep.subr.mxu0 0.0
    %727 = vmatpush1.msra.mxu0 %v686
    %728 = vmatprep.subr.mxu0 0.0
    %729 = vmatpush1.msra.mxu0 %v685
    %730 = vmatprep.subr.mxu0 0.0
    %731 = vmatpush1.msra.mxu0 %v684
    %732 = vmatprep.subr.mxu0 0.0
    %733 = vmatpush2.msra.mxu0 0.0
    %734 = vmatprep.subr.mxu0 0.0
    %735 = vmatpush2.msra.mxu0 0.0
    %736 = vmatprep.subr.mxu0 0.0
    %737 = vmatpush2.msra.mxu0 0.0
    %738 = vmatprep.subr.mxu0 0.0
    %739 = vmatpush2.msra.mxu0 0.0
    %740 = vmatprep.subr.mxu0 0.0
    %741 = vmatpush2.msra.mxu0 0.0
    %742 = vmatprep.subr.mxu0 0.0
    %743 = vmatpush2.msra.mxu0 0.0
    %744 = vmatprep.subr.mxu0 0.0
    %745 = vmatpush2.msra.mxu0 0.0
    %746 = vmatprep.subr.mxu0 0.0
    %747 = vmatpush2.msra.mxu0 0.0
    %748 = vmatprep.subr.mxu0 0.0
    %749 = vmatpush2.msra.mxu0 0.0
    %750 = vmatprep.subr.mxu0 0.0
    %751 = vmatpush2.msra.mxu0 0.0
    %752 = vmatprep.subr.mxu0 0.0
    %753 = vmatpush2.msra.mxu0 0.0
    %754 = vmatprep.subr.mxu0 0.0
    %755 = vmatpush2.msra.mxu0 0.0
    %756 = vmatprep.subr.mxu0 0.0
    %757 = vmatpush2.msra.mxu0 0.0
    %758 = vmatprep.subr.mxu0 0.0
    %759 = vmatpush2.msra.mxu0 0.0
    %760 = vmatprep.subr.mxu0 0.0
    %761 = vmatpush2.msra.mxu0 0.0
    %762 = vmatprep.subr.mxu0 0.0
    %763 = vmatpush2.msra.mxu0 0.0
    %764 = vmatprep.mubr.f32.mxu0 0.0
    %765 = vmatmul.mubr.f32.gmra.mxu0 %v689
    %v766 = vpop.f32.mrf.mxu0
    %v767 = vadd.f32 0.0, %v766
    %v768 = vpop.f32.mrf.mxu0
    %769 = vmatprep.mubr.f32.mxu0 0.0
    %770 = vmatmul.mubr.f32.gmra.mxu0 %v692
    %v771 = vpop.f32.mrf.mxu0
    %v772 = vadd.f32 0.0, %v771
    %v773 = vpop.f32.mrf.mxu0
    %774 = vmatprep.mubr.f32.mxu0 0.0
    %775 = vmatmul.mubr.f32.gmra.mxu0 %v695
    %v776 = vpop.f32.mrf.mxu0
    %v777 = vadd.f32 0.0, %v776
    %v778 = vpop.f32.mrf.mxu0
    %779 = vmatprep.mubr.f32.mxu0 0.0
    %780 = vmatmul.mubr.f32.gmra.mxu0 %v698
    %v781 = vpop.f32.mrf.mxu0
    %v782 = vadd.f32 0.0, %v781
    %v783 = vpop.f32.mrf.mxu0
    %784 = vdwg.mxu0
    %v785 = vadd.f32 %v676, %v767
    %v786 = vadd.f32 %v677, %v772
    %v787 = vadd.f32 %v678, %v777
    %v788 = vadd.f32 %v679, %v782
    %v789 = vld [vmem:[%s2] sm:$0x1]
    %v790 = vlaneseq
    %v791 = vshrl.u32 %v790, 7
    %v792 = vsub.s32 0, %v791
    %v793 = vrot.slane %v789, %v792
    %v794 = vadd.f32 %v785, %v793
    %v795 = vadd.f32 %v786, %v793
    %v796 = vadd.f32 %v787, %v793
    %v797 = vadd.f32 %v788, %v793
    %vm798 = vcmask 785408
    %v799 = vsel %vm798, %v794, 0.0
    %v800 = vsel %vm798, %v795, 0.0
    %v801 = vadd.f32 %v799, %v800
    %v802 = vrot.slane %v801, 4
    %v803 = vadd.f32 %v801, %v802
    %v804 = vrot.slane %v803, 2
    %v805 = vadd.f32 %v803, %v804
    %v806 = vrot.slane %v805, 1
    %v807 = vadd.f32 %v805, %v806
    %v808 = vsel %vm798, %v796, 0.0
    %v809 = vsel %vm798, %v797, 0.0
    %v810 = vadd.f32 %v808, %v809
    %v811 = vrot.slane %v810, 4
    %v812 = vadd.f32 %v810, %v811
    %v813 = vrot.slane %v812, 2
    %v814 = vadd.f32 %v812, %v813
    %v815 = vrot.slane %v814, 1
    %v816 = vadd.f32 %v814, %v815
    %v817 = vmul.f32 %v794, %v794
    %v818 = vmul.f32 %v795, %v795
    %v819 = vmul.f32 %v796, %v796
    %v820 = vmul.f32 %v797, %v797
    %v821 = vsel %vm798, %v817, 0.0
    %v822 = vsel %vm798, %v818, 0.0
    %v823 = vadd.f32 %v821, %v822
    %v824 = vrot.slane %v823, 4
    %v825 = vadd.f32 %v823, %v824
    %v826 = vrot.slane %v825, 2
    %v827 = vadd.f32 %v825, %v826
    %v828 = vrot.slane %v827, 1
    %v829 = vadd.f32 %v827, %v828
    %v830 = vsel %vm798, %v819, 0.0
    %v831 = vsel %vm798, %v820, 0.0
    %v832 = vadd.f32 %v830, %v831
    %v833 = vrot.slane %v832, 4
    %v834 = vadd.f32 %v832, %v833
    %v835 = vrot.slane %v834, 2
    %v836 = vadd.f32 %v834, %v835
    %v837 = vrot.slane %v836, 1
    %v838 = vadd.f32 %v836, %v837
    %v839 = vld [vmem:[%s4] sm:$0xff]
    %v840 = vld [vmem:[%s4 + $0x8] sm:$0xff]
    %v841 = vld [vmem:[%s4 + $0x10] sm:$0xff]
    %v842 = vld [vmem:[%s4 + $0x18] sm:$0xff]
    %v843 = vld [vmem:[%s4 + $0x20] sm:$0xff]
    %v844 = vld [vmem:[%s4 + $0x28] sm:$0xff]
    %v845 = vld [vmem:[%s4 + $0x30] sm:$0xff]
    %v846 = vld [vmem:[%s4 + $0x38] sm:$0xff]
    %v847 = vld [vmem:[%s4 + $0x40] sm:$0xff]
    %v848 = vld [vmem:[%s4 + $0x48] sm:$0xff]
    %v849 = vld [vmem:[%s4 + $0x50] sm:$0xff]
    %v850 = vld [vmem:[%s4 + $0x58] sm:$0xff]
    %vm853 = vcmask 1041409
    %v854 = vsel %vm853, %v816, %v807
    %v855 = vsel %vm798, %v854, 0
    %857 = vmatprep.subr.mxu0 0.0
    %858 = vmatpush1.msra.mxu0 0.0
    %859 = vmatprep.subr.mxu0 0.0
    %860 = vmatpush1.msra.mxu0 0.0
    %861 = vmatprep.subr.mxu0 0.0
    %862 = vmatpush1.msra.mxu0 0.0
    %863 = vmatprep.subr.mxu0 0.0
    %864 = vmatpush1.msra.mxu0 0.0
    %865 = vmatprep.subr.mxu0 0.0
    %866 = vmatpush1.msra.mxu0 %v850
    %867 = vmatprep.subr.mxu0 0.0
    %868 = vmatpush1.msra.mxu0 %v849
    %869 = vmatprep.subr.mxu0 0.0
    %870 = vmatpush1.msra.mxu0 %v848
    %871 = vmatprep.subr.mxu0 0.0
    %872 = vmatpush1.msra.mxu0 %v847
    %873 = vmatprep.subr.mxu0 0.0
    %874 = vmatpush1.msra.mxu0 %v846
    %875 = vmatprep.subr.mxu0 0.0
    %876 = vmatpush1.msra.mxu0 %v845
    %877 = vmatprep.subr.mxu0 0.0
    %878 = vmatpush1.msra.mxu0 %v844
    %879 = vmatprep.subr.mxu0 0.0
    %880 = vmatpush1.msra.mxu0 %v843
    %881 = vmatprep.subr.mxu0 0.0
    %882 = vmatpush1.msra.mxu0 %v842
    %883 = vmatprep.subr.mxu0 0.0
    %884 = vmatpush1.msra.mxu0 %v841
    %885 = vmatprep.subr.mxu0 0.0
    %886 = vmatpush1.msra.mxu0 %v840
    %887 = vmatprep.subr.mxu0 0.0
    %888 = vmatpush1.msra.mxu0 %v839
    %889 = vmatprep.subr.mxu0 0.0
    %890 = vmatpush2.msra.mxu0 0.0
    %891 = vmatprep.subr.mxu0 0.0
    %892 = vmatpush2.msra.mxu0 0.0
    %893 = vmatprep.subr.mxu0 0.0
    %894 = vmatpush2.msra.mxu0 0.0
    %895 = vmatprep.subr.mxu0 0.0
    %896 = vmatpush2.msra.mxu0 0.0
    %897 = vmatprep.subr.mxu0 0.0
    %898 = vmatpush2.msra.mxu0 0.0
    %899 = vmatprep.subr.mxu0 0.0
    %900 = vmatpush2.msra.mxu0 0.0
    %901 = vmatprep.subr.mxu0 0.0
    %902 = vmatpush2.msra.mxu0 0.0
    %903 = vmatprep.subr.mxu0 0.0
    %904 = vmatpush2.msra.mxu0 0.0
    %905 = vmatprep.subr.mxu0 0.0
    %906 = vmatpush2.msra.mxu0 0.0
    %907 = vmatprep.subr.mxu0 0.0
    %908 = vmatpush2.msra.mxu0 0.0
    %909 = vmatprep.subr.mxu0 0.0
    %910 = vmatpush2.msra.mxu0 0.0
    %911 = vmatprep.subr.mxu0 0.0
    %912 = vmatpush2.msra.mxu0 0.0
    %913 = vmatprep.subr.mxu0 0.0
    %914 = vmatpush2.msra.mxu0 0.0
    %915 = vmatprep.subr.mxu0 0.0
    %916 = vmatpush2.msra.mxu0 0.0
    %917 = vmatprep.subr.mxu0 0.0
    %918 = vmatpush2.msra.mxu0 0.0
    %919 = vmatprep.subr.mxu0 0.0
    %920 = vmatpush2.msra.mxu0 0.0
    %921 = vmatprep.mubr.f32.mxu0 0.0
    %922 = vmatmul.mubr.f32.gmra.mxu0 %v855
    %v923 = vpop.f32.mrf.mxu0
    %v924 = vadd.f32 0.0, %v923
    %v925 = vpop.f32.mrf.mxu0
    %926 = vdwg.mxu0
    %v929 = vsel %vm853, %v838, %v829
    %v930 = vsel %vm798, %v929, 0
    %932 = vmatprep.subr.mxu0 0.0
    %933 = vmatpush1.msra.mxu0 0.0
    %934 = vmatprep.subr.mxu0 0.0
    %935 = vmatpush1.msra.mxu0 0.0
    %936 = vmatprep.subr.mxu0 0.0
    %937 = vmatpush1.msra.mxu0 0.0
    %938 = vmatprep.subr.mxu0 0.0
    %939 = vmatpush1.msra.mxu0 0.0
    %940 = vmatprep.subr.mxu0 0.0
    %941 = vmatpush1.msra.mxu0 %v850
    %942 = vmatprep.subr.mxu0 0.0
    %943 = vmatpush1.msra.mxu0 %v849
    %944 = vmatprep.subr.mxu0 0.0
    %945 = vmatpush1.msra.mxu0 %v848
    %946 = vmatprep.subr.mxu0 0.0
    %947 = vmatpush1.msra.mxu0 %v847
    %948 = vmatprep.subr.mxu0 0.0
    %949 = vmatpush1.msra.mxu0 %v846
    %950 = vmatprep.subr.mxu0 0.0
    %951 = vmatpush1.msra.mxu0 %v845
    %952 = vmatprep.subr.mxu0 0.0
    %953 = vmatpush1.msra.mxu0 %v844
    %954 = vmatprep.subr.mxu0 0.0
    %955 = vmatpush1.msra.mxu0 %v843
    %956 = vmatprep.subr.mxu0 0.0
    %957 = vmatpush1.msra.mxu0 %v842
    %958 = vmatprep.subr.mxu0 0.0
    %959 = vmatpush1.msra.mxu0 %v841
    %960 = vmatprep.subr.mxu0 0.0
    %961 = vmatpush1.msra.mxu0 %v840
    %962 = vmatprep.subr.mxu0 0.0
    %963 = vmatpush1.msra.mxu0 %v839
    %964 = vmatprep.subr.mxu0 0.0
    %965 = vmatpush2.msra.mxu0 0.0
    %966 = vmatprep.subr.mxu0 0.0
    %967 = vmatpush2.msra.mxu0 0.0
    %968 = vmatprep.subr.mxu0 0.0
    %969 = vmatpush2.msra.mxu0 0.0
    %970 = vmatprep.subr.mxu0 0.0
    %971 = vmatpush2.msra.mxu0 0.0
    %972 = vmatprep.subr.mxu0 0.0
    %973 = vmatpush2.msra.mxu0 0.0
    %974 = vmatprep.subr.mxu0 0.0
    %975 = vmatpush2.msra.mxu0 0.0
    %976 = vmatprep.subr.mxu0 0.0
    %977 = vmatpush2.msra.mxu0 0.0
    %978 = vmatprep.subr.mxu0 0.0
    %979 = vmatpush2.msra.mxu0 0.0
    %980 = vmatprep.subr.mxu0 0.0
    %981 = vmatpush2.msra.mxu0 0.0
    %982 = vmatprep.subr.mxu0 0.0
    %983 = vmatpush2.msra.mxu0 0.0
    %984 = vmatprep.subr.mxu0 0.0
    %985 = vmatpush2.msra.mxu0 0.0
    %986 = vmatprep.subr.mxu0 0.0
    %987 = vmatpush2.msra.mxu0 0.0
    %988 = vmatprep.subr.mxu0 0.0
    %989 = vmatpush2.msra.mxu0 0.0
    %990 = vmatprep.subr.mxu0 0.0
    %991 = vmatpush2.msra.mxu0 0.0
    %992 = vmatprep.subr.mxu0 0.0
    %993 = vmatpush2.msra.mxu0 0.0
    %994 = vmatprep.subr.mxu0 0.0
    %995 = vmatpush2.msra.mxu0 0.0
    %996 = vmatprep.mubr.f32.mxu0 0.0
    %997 = vmatmul.mubr.f32.gmra.mxu0 %v930
    %v998 = vpop.f32.mrf.mxu0
    %v999 = vadd.f32 0.0, %v998
    %v1000 = vpop.f32.mrf.mxu0
    %1001 = vdwg.mxu0
    %v1002 = vmul.f32 %v924, %v924
    %v1003 = vsub.f32 %v999, %v1002
    %v1004 = vadd.f32 %v1003, 1e-05
    %v1005 = vrsqrt.pop %v1004
    %v1006 = vld [vmem:[%s2 + $0x1] sm:$0x1]
    %v1007 = vlaneseq
    %v1008 = vshrl.u32 %v1007, 7
    %v1009 = vsub.s32 0, %v1008
    %v1010 = vrot.slane %v1006, %v1009
    %v1011 = vmul.f32 %v1005, %v1010
    %v1012 = vld [vmem:[%s2 + $0x2] sm:$0x1]
    %v1013 = vmul.f32 %v924, %v1011
    %v1014 = vlaneseq
    %v1015 = vshrl.u32 %v1014, 7
    %v1016 = vsub.s32 0, %v1015
    %v1017 = vrot.slane %v1012, %v1016
    %v1018 = vsub.f32 %v1017, %v1013
    %v1021 = vunpack.c.l.s4 1966171168
    %v1022 = vunpack.c.0.s8 %v1021
    %v1023 = vlaneseq
    %v1024 = vshrl.u32 %v1023, 7
    %v1025 = vsub.s32 %v1022, %v1024
    %v1026 = vrot.slane %v1011, %v1025
    %v1027 = vcombine.high %v1026, %v1026
    %v1029 = vunpack.c.l.s4 1966171168
    %v1030 = vunpack.c.0.s8 %v1029
    %v1031 = vlaneseq
    %v1032 = vshrl.u32 %v1031, 7
    %v1033 = vsub.s32 %v1030, %v1032
    %v1034 = vrot.slane %v1026, %v1033
    %v1036 = vunpack.c.l.s4 1966171168
    %v1037 = vunpack.c.0.s8 %v1036
    %v1038 = vlaneseq
    %v1039 = vshrl.u32 %v1038, 7
    %v1040 = vsub.s32 %v1037, %v1039
    %v1041 = vrot.slane %v1027, %v1040
    %v1042 = vlaneseq
    %v1043 = vshrl.u32 %v1042, 7
    %v1044 = vsub.s32 0, %v1043
    %v1045 = vrot.slane %v1034, %v1044
    %v1046 = vlaneseq
    %v1047 = vshrl.u32 %v1046, 7
    %v1048 = vsub.s32 0, %v1047
    %v1049 = vrot.slane %v1041, %v1048
    %v1052 = vmul.f32 %v794, %v1045
    %v1053 = vmul.f32 %v795, %v1045
    %v1054 = vmul.f32 %v796, %v1049
    %v1055 = vmul.f32 %v797, %v1049
    %v1058 = vunpack.c.l.s4 1966171168
    %v1059 = vunpack.c.0.s8 %v1058
    %v1060 = vlaneseq
    %v1061 = vshrl.u32 %v1060, 7
    %v1062 = vsub.s32 %v1059, %v1061
    %v1063 = vrot.slane %v1018, %v1062
    %v1064 = vcombine.high %v1063, %v1063
    %v1066 = vunpack.c.l.s4 1966171168
    %v1067 = vunpack.c.0.s8 %v1066
    %v1068 = vlaneseq
    %v1069 = vshrl.u32 %v1068, 7
    %v1070 = vsub.s32 %v1067, %v1069
    %v1071 = vrot.slane %v1063, %v1070
    %v1073 = vunpack.c.l.s4 1966171168
    %v1074 = vunpack.c.0.s8 %v1073
    %v1075 = vlaneseq
    %v1076 = vshrl.u32 %v1075, 7
    %v1077 = vsub.s32 %v1074, %v1076
    %v1078 = vrot.slane %v1064, %v1077
    %v1079 = vlaneseq
    %v1080 = vshrl.u32 %v1079, 7
    %v1081 = vsub.s32 0, %v1080
    %v1082 = vrot.slane %v1071, %v1081
    %v1083 = vlaneseq
    %v1084 = vshrl.u32 %v1083, 7
    %v1085 = vsub.s32 0, %v1084
    %v1086 = vrot.slane %v1078, %v1085
    %v1089 = vadd.f32 %v1052, %v1082
    %v1090 = vadd.f32 %v1053, %v1082
    %v1091 = vadd.f32 %v1054, %v1086
    %v1092 = vadd.f32 %v1055, %v1086
    %v1093 = vmax.f32 %v1089, 0.0
    %v1094 = vmax.f32 %v1090, 0.0
    %v1095 = vmax.f32 %v1091, 0.0
    %v1096 = vmax.f32 %v1092, 0.0
    %v1097 = vld [vmem:[%s3] sm:$0xff]
    %v1098 = vld [vmem:[%s3 + $0x8] sm:$0xff]
    %v1099 = vld [vmem:[%s3 + $0x10] sm:$0xff]
    %v1100 = vld [vmem:[%s3 + $0x18] sm:$0xff]
    %v1101 = vld [vmem:[%s3 + $0x20] sm:$0xff]
    %v1102 = vld [vmem:[%s3 + $0x28] sm:$0xff]
    %v1103 = vld [vmem:[%s3 + $0x30] sm:$0xff]
    %v1104 = vld [vmem:[%s3 + $0x38] sm:$0xff]
    %v1105 = vld [vmem:[%s3 + $0x40] sm:$0xff]
    %v1106 = vld [vmem:[%s3 + $0x48] sm:$0xff]
    %v1107 = vld [vmem:[%s3 + $0x50] sm:$0xff]
    %v1108 = vld [vmem:[%s3 + $0x58] sm:$0xff]
    %v1110 = vsel %vm798, %v1093, 0
    %v1113 = vsel %vm798, %v1094, 0
    %v1116 = vsel %vm798, %v1095, 0
    %v1119 = vsel %vm798, %v1096, 0
    %1121 = vmatprep.subr.mxu0 0.0
    %1122 = vmatpush1.msra.mxu0 0.0
    %1123 = vmatprep.subr.mxu0 0.0
    %1124 = vmatpush1.msra.mxu0 0.0
    %1125 = vmatprep.subr.mxu0 0.0
    %1126 = vmatpush1.msra.mxu0 0.0
    %1127 = vmatprep.subr.mxu0 0.0
    %1128 = vmatpush1.msra.mxu0 0.0
    %1129 = vmatprep.subr.mxu0 0.0
    %1130 = vmatpush1.msra.mxu0 %v1108
    %1131 = vmatprep.subr.mxu0 0.0
    %1132 = vmatpush1.msra.mxu0 %v1107
    %1133 = vmatprep.subr.mxu0 0.0
    %1134 = vmatpush1.msra.mxu0 %v1106
    %1135 = vmatprep.subr.mxu0 0.0
    %1136 = vmatpush1.msra.mxu0 %v1105
    %1137 = vmatprep.subr.mxu0 0.0
    %1138 = vmatpush1.msra.mxu0 %v1104
    %1139 = vmatprep.subr.mxu0 0.0
    %1140 = vmatpush1.msra.mxu0 %v1103
    %1141 = vmatprep.subr.mxu0 0.0
    %1142 = vmatpush1.msra.mxu0 %v1102
    %1143 = vmatprep.subr.mxu0 0.0
    %1144 = vmatpush1.msra.mxu0 %v1101
    %1145 = vmatprep.subr.mxu0 0.0
    %1146 = vmatpush1.msra.mxu0 %v1100
    %1147 = vmatprep.subr.mxu0 0.0
    %1148 = vmatpush1.msra.mxu0 %v1099
    %1149 = vmatprep.subr.mxu0 0.0
    %1150 = vmatpush1.msra.mxu0 %v1098
    %1151 = vmatprep.subr.mxu0 0.0
    %1152 = vmatpush1.msra.mxu0 %v1097
    %1153 = vmatprep.subr.mxu0 0.0
    %1154 = vmatpush2.msra.mxu0 0.0
    %1155 = vmatprep.subr.mxu0 0.0
    %1156 = vmatpush2.msra.mxu0 0.0
    %1157 = vmatprep.subr.mxu0 0.0
    %1158 = vmatpush2.msra.mxu0 0.0
    %1159 = vmatprep.subr.mxu0 0.0
    %1160 = vmatpush2.msra.mxu0 0.0
    %1161 = vmatprep.subr.mxu0 0.0
    %1162 = vmatpush2.msra.mxu0 0.0
    %1163 = vmatprep.subr.mxu0 0.0
    %1164 = vmatpush2.msra.mxu0 0.0
    %1165 = vmatprep.subr.mxu0 0.0
    %1166 = vmatpush2.msra.mxu0 0.0
    %1167 = vmatprep.subr.mxu0 0.0
    %1168 = vmatpush2.msra.mxu0 0.0
    %1169 = vmatprep.subr.mxu0 0.0
    %1170 = vmatpush2.msra.mxu0 0.0
    %1171 = vmatprep.subr.mxu0 0.0
    %1172 = vmatpush2.msra.mxu0 0.0
    %1173 = vmatprep.subr.mxu0 0.0
    %1174 = vmatpush2.msra.mxu0 0.0
    %1175 = vmatprep.subr.mxu0 0.0
    %1176 = vmatpush2.msra.mxu0 0.0
    %1177 = vmatprep.subr.mxu0 0.0
    %1178 = vmatpush2.msra.mxu0 0.0
    %1179 = vmatprep.subr.mxu0 0.0
    %1180 = vmatpush2.msra.mxu0 0.0
    %1181 = vmatprep.subr.mxu0 0.0
    %1182 = vmatpush2.msra.mxu0 0.0
    %1183 = vmatprep.subr.mxu0 0.0
    %1184 = vmatpush2.msra.mxu0 0.0
    %1185 = vmatprep.mubr.f32.mxu0 0.0
    %1186 = vmatmul.mubr.f32.gmra.mxu0 %v1110
    %v1187 = vpop.f32.mrf.mxu0
    %v1188 = vadd.f32 0.0, %v1187
    %v1189 = vpop.f32.mrf.mxu0
    %1190 = vmatprep.mubr.f32.mxu0 0.0
    %1191 = vmatmul.mubr.f32.gmra.mxu0 %v1113
    %v1192 = vpop.f32.mrf.mxu0
    %v1193 = vadd.f32 0.0, %v1192
    %v1194 = vpop.f32.mrf.mxu0
    %1195 = vmatprep.mubr.f32.mxu0 0.0
    %1196 = vmatmul.mubr.f32.gmra.mxu0 %v1116
    %v1197 = vpop.f32.mrf.mxu0
    %v1198 = vadd.f32 0.0, %v1197
    %v1199 = vpop.f32.mrf.mxu0
    %1200 = vmatprep.mubr.f32.mxu0 0.0
    %1201 = vmatmul.mubr.f32.gmra.mxu0 %v1119
    %v1202 = vpop.f32.mrf.mxu0
    %v1203 = vadd.f32 0.0, %v1202
    %v1204 = vpop.f32.mrf.mxu0
    %1205 = vdwg.mxu0
    %v1206 = vld [vmem:[%s3 + $0x60] sm:$0x1]
    %v1207 = vlaneseq
    %v1208 = vshrl.u32 %v1207, 7
    %v1209 = vsub.s32 0, %v1208
    %v1210 = vrot.slane %v1206, %v1209
    %v1211 = vadd.f32 %v1188, %v1210
    %v1212 = vadd.f32 %v1193, %v1210
    %v1213 = vadd.f32 %v1198, %v1210
    %v1214 = vadd.f32 %v1203, %v1210
    %v1215 = vadd.f32 %v1211, %v21
    %v1216 = vadd.f32 %v1212, %v22
    %v1217 = vadd.f32 %v1213, %v23
    %v1218 = vadd.f32 %v1214, %v24
    %1219 = vst.msk [vmem:[#allocation3] sm:$0xff] %vm25, %v1215
    %1220 = vst.msk [vmem:[#allocation3 + $0x8] sm:$0xff] %vm25, %v1216
    %1221 = vst.msk [vmem:[#allocation3 + $0x10] sm:$0xff] %vm25, %v1217
    %1222 = vst.msk [vmem:[#allocation3 + $0x18] sm:$0xff] %vm25, %v1218
    // Predicated region
    $region22: #{tpu_custom_call.1} parent=1 // pred_check
      _
    $region23: #{tpu_custom_call.1} parent=1 // pred_check_branch
      %1224 = sbr.rel (0) target = $region25
    $region24: #{tpu_custom_call.1} parent=1 // pred_region
      %s1226 = ssub.s32 512, 512
      %1227 = vsyncadd [#allocation4], %s1226
      %s1228 = sshll.u32 [#allocation3], 4
      %s1229 = int_to_ptr.vmem [resolvable:$true] %s1228
      %1234 = dma.vmem_to_hbm [thread:$0]  %s1229, 512, %s5, [#allocation4], 128, 128, 8
    $region25: #{tpu_custom_call.1} parent=1 // pred_fallthru
      _
    // Predicated region
    $region26: #{tpu_custom_call.1} parent=1 // pred_check
      _
    $region27: #{tpu_custom_call.1} parent=1 // pred_check_branch
      %1236 = sbr.rel (0) target = $region29
    $region28: #{tpu_custom_call.1} parent=1 // pred_region
      %1237 = dma.done [#allocation4], 512
    $region29: #{tpu_custom_call.1} parent=1 // pred_fallthru
      _
    %1238 = vsyncpa [#allocation4], 1

</llo_original>
